<compile_context>
chip_gen: v6e
topology: v6e:2x2x1
jax: 0.10.0
libtpu: 0.0.40
codegen_flags: <defaults>
</compile_context>

<pallas_src>
import jax
import jax.numpy as jnp
from jax.experimental import pallas as pl
from jax.experimental.pallas import tpu as pltpu


# ------------------------------- projections --------------------------------

def _q_proj_kernel(x_ref, w_ref, b_ref, o_ref):
    # 1x1 conv == per-token linear:  (1, tn, C) @ (C, Cq) + (1, Cq)
    o_ref[0] = (
        jnp.dot(x_ref[0], w_ref[...], preferred_element_type=jnp.float32)
        + b_ref[...]
    ).astype(o_ref.dtype)


def _kv_proj_kernel(x_ref, wk_ref, wv_ref, bv_ref, k_ref, v_ref):
    # Shared x DMA for both projections.  The key bias is mathematically a
    # no-op under softmax (constant along the softmax axis) so it is dropped.
    x = x_ref[0]
    k_ref[0] = jnp.dot(
        x, wk_ref[...], preferred_element_type=jnp.float32).astype(k_ref.dtype)
    v_ref[0] = (
        jnp.dot(x, wv_ref[...], preferred_element_type=jnp.float32) + bv_ref[...]
    ).astype(v_ref.dtype)


def _project_q(x_q, wq_t, bq, tn):
    B, NQ, C = x_q.shape
    Cq = wq_t.shape[1]
    return pl.pallas_call(
        _q_proj_kernel,
        out_shape=jax.ShapeDtypeStruct((B, NQ, Cq), x_q.dtype),
        grid_spec=pltpu.PrefetchScalarGridSpec(
            num_scalar_prefetch=0,
            grid=(B, NQ // tn),
            in_specs=[
                pl.BlockSpec((1, tn, C), lambda b, n: (b, n, 0)),
                pl.BlockSpec((C, Cq), lambda b, n: (0, 0)),
                pl.BlockSpec((1, Cq), lambda b, n: (0, 0)),
            ],
            out_specs=pl.BlockSpec((1, tn, Cq), lambda b, n: (b, n, 0)),
        ),
        compiler_params=pltpu.CompilerParams(
            dimension_semantics=("parallel", "parallel")),
    )(x_q, wq_t, bq)


def _project_kv(x_kv, wk_t, wv_t, bv, tn):
    B, N, C = x_kv.shape
    Cq = wk_t.shape[1]
    return pl.pallas_call(
        _kv_proj_kernel,
        out_shape=(jax.ShapeDtypeStruct((B, N, Cq), x_kv.dtype),
                   jax.ShapeDtypeStruct((B, N, C), x_kv.dtype)),
        grid_spec=pltpu.PrefetchScalarGridSpec(
            num_scalar_prefetch=0,
            grid=(B, N // tn),
            in_specs=[
                pl.BlockSpec((1, tn, C), lambda b, n: (b, n, 0)),
                pl.BlockSpec((C, Cq), lambda b, n: (0, 0)),
                pl.BlockSpec((C, C), lambda b, n: (0, 0)),
                pl.BlockSpec((1, C), lambda b, n: (0, 0)),
            ],
            out_specs=(pl.BlockSpec((1, tn, Cq), lambda b, n: (b, n, 0)),
                       pl.BlockSpec((1, tn, C), lambda b, n: (b, n, 0))),
        ),
        compiler_params=pltpu.CompilerParams(
            dimension_semantics=("parallel", "parallel")),
    )(x_kv, wk_t, wv_t, bv)


# ----------------------------- flash attention -------------------------------

def _flash_attn_kernel(q_ref, k_ref, v_ref, o_ref, m_sc, l_sc, acc_sc):
    kv = pl.program_id(2)

    @pl.when(kv == 0)
    def _():
        m_sc[...] = jnp.full_like(m_sc, -jnp.inf)
        l_sc[...] = jnp.zeros_like(l_sc)
        acc_sc[...] = jnp.zeros_like(acc_sc)

    q = q_ref[0]  # (tq, Cq)
    k = k_ref[0]  # (tk, Cq)
    v = v_ref[0]  # (tk, C)

    # scores[i, j] = q_i . k_j : contract the channel (lane) axis of both
    # operands directly -- no explicit k.T relayout.
    s = jax.lax.dot_general(
        q, k, dimension_numbers=(((1,), (1,)), ((), ())),
        preferred_element_type=jnp.float32)                     # (tq, tk)

    m_prev = m_sc[...]
    m_new = jnp.maximum(m_prev, jnp.max(s, axis=-1, keepdims=True))
    alpha = jnp.exp(m_prev - m_new)
    p = jnp.exp(s - m_new)                                       # un-normalized probs
    l_sc[...] = alpha * l_sc[...] + jnp.sum(p, axis=-1, keepdims=True)
    acc_sc[...] = alpha * acc_sc[...] + jnp.dot(
        p, v, preferred_element_type=jnp.float32)                # deferred normalization
    m_sc[...] = m_new

    @pl.when(kv == pl.num_programs(2) - 1)
    def _():
        # Normalize once at the end: per-row reciprocal instead of an
        # (HW x HW) divide.  (approx=True would push this onto the EUP.)
        inv = pl.reciprocal(l_sc[...], approx=False)
        o_ref[0] = (acc_sc[...] * inv).astype(o_ref.dtype)


def _flash_attention(q, k, v, tq, tk):
    B, NQ, Cq = q.shape
    _, NK, _ = k.shape
    C = v.shape[-1]
    return pl.pallas_call(
        _flash_attn_kernel,
        out_shape=jax.ShapeDtypeStruct((B, NQ, C), q.dtype),
        grid_spec=pltpu.PrefetchScalarGridSpec(
            num_scalar_prefetch=0,
            grid=(B, NQ // tq, NK // tk),
            in_specs=[
                pl.BlockSpec((1, tq, Cq), lambda b, qi, ki: (b, qi, 0)),
                pl.BlockSpec((1, tk, Cq), lambda b, qi, ki: (b, ki, 0)),
                pl.BlockSpec((1, tk, C), lambda b, qi, ki: (b, ki, 0)),
            ],
            out_specs=pl.BlockSpec((1, tq, C), lambda b, qi, ki: (b, qi, 0)),
            scratch_shapes=[
                pltpu.VMEM((tq, 1), jnp.float32),   # running max  m
                pltpu.VMEM((tq, 1), jnp.float32),   # running denom l
                pltpu.VMEM((tq, C), jnp.float32),   # un-normalized output acc
            ],
        ),
        compiler_params=pltpu.CompilerParams(
            # batch + query-tile axes are independent -> megacore parallel;
            # the kv axis is the online-softmax reduction -> arbitrary (last).
            dimension_semantics=("parallel", "parallel", "arbitrary"),
            vmem_limit_bytes=32 * 1024 * 1024,
        ),
    )(q, k, v)


# --------------------------------- wrapper -----------------------------------

def _row_tile(n, cap):
    """Largest tile <= cap (multiple of 8) dividing n, else the full extent."""
    for t in (cap, 512, 256, 128, 64, 32, 16, 8):
        if t <= cap and n % t == 0:
            return t
    return n


def attention_based_downsampling(x_nchw, params, target_width, *, tq=128, tk=256):
    """Forward of AttentionBasedDownsampling.  x_nchw: (B, C, H, W) f32.
    Returns (B, C, H, target_width)."""
    B, C, H, W = x_nchw.shape
    assert 0 < target_width <= W
    Cq = params["wq"].shape[0]
    HW = H * W
    HQ = H * target_width

    # NCHW -> NHWC; slice the kept columns *before* any compute so only the
    # surviving queries are projected / attended / written back.
    x_nhwc = jnp.transpose(x_nchw, (0, 2, 3, 1))
    x_kv = x_nhwc.reshape(B, HW, C)                            # keys/values see everything
    x_q = x_nhwc[:, :, :target_width, :].reshape(B, HQ, C)     # only kept queries

    # (Cout, Cin) conv weights -> (Cin, Cout) so kernels compute x @ W.
    wq_t = params["wq"].T
    wk_t = params["wk"].T
    wv_t = params["wv"].T
    bq = params["bq"].reshape(1, Cq)
    bv = params["bv"].reshape(1, C)
    # params["bk"] intentionally unused: constant along the softmax axis.

    tq = _row_tile(HQ, tq)
    tk = _row_tile(HW, tk)

    q = _project_q(x_q, wq_t, bq, _row_tile(HQ, 512))          # (B, HQ, Cq)
    k, v = _project_kv(x_kv, wk_t, wv_t, bv, _row_tile(HW, 512))
    out_q = _flash_attention(q, k, v, tq, tk)                  # (B, HQ, C)

    # (B, HQ, C) -> (B, C, H, target_width); width slice is already implicit.
    return jnp.transpose(out_q.reshape(B, H, target_width, C), (0, 3, 1, 2))


# ------------------------------ init / reference -----------------------------

def init_params(key, channels, reduction_ratio=2):
    """kaiming_normal weights like the PyTorch module; biases are given small
    nonzero values here purely to exercise the bias paths in the test
    (the module itself zero-inits them)."""
    cq = channels // reduction_ratio
    kq, kk, kv, kb = jax.random.split(key, 4)
    std = (2.0 / channels) ** 0.5
    b1, b2, b3 = jax.random.split(kb, 3)
    return {
        "wq": jax.random.normal(kq, (cq, channels), jnp.float32) * std,
        "wk": jax.random.normal(kk, (cq, channels), jnp.float32) * std,
        "wv": jax.random.normal(kv, (channels, channels), jnp.float32) * std,
        "bq": jax.random.normal(b1, (cq,), jnp.float32) * 0.1,
        "bk": jax.random.normal(b2, (cq,), jnp.float32) * 0.1,
        "bv": jax.random.normal(b3, (channels,), jnp.float32) * 0.1,
    }


def _reference(x_nchw, params, target_width):
    """Pure-JAX reference implementing the exact PyTorch math (incl. bk)."""
    B, C, H, W = x_nchw.shape
    HW = H * W
    x = jnp.transpose(x_nchw, (0, 2, 3, 1)).reshape(B, HW, C)
    q = x @ params["wq"].T + params["bq"]
    k = x @ params["wk"].T + params["bk"]
    v = x @ params["wv"].T + params["bv"]
    scores = jnp.einsum("bic,bjc->bij", q, k)
    probs = jax.nn.softmax(scores, axis=-1)
    out = jnp.einsum("bij,bjc->bic", probs, v)
    out = jnp.transpose(out.reshape(B, H, W, C), (0, 3, 1, 2))
    return out[:, :, :, :target_width]


if __name__ == "__main__":
    B, C, H, W = 2, 4, 16, 16
    target_width = 8

    key = jax.random.PRNGKey(0)
    kx, kp = jax.random.split(key)
    x = jax.random.normal(kx, (B, C, H, W), jnp.float32)
    params = init_params(kp, C)

    # tk=128 on this small shape so the kv axis has 2 tiles and the
    # online-softmax accumulation path is actually exercised.
    out = attention_based_downsampling(x, params, target_width, tq=128, tk=128)
    out = jax.block_until_ready(out)

    ref = _reference(x, params, target_width)
    assert out.shape == (B, C, H, target_width), out.shape
    assert jnp.allclose(out, ref, rtol=1e-4, atol=1e-4), "mismatch vs reference"

    print("KERNEL_OK")
</pallas_src>

<mosaic_0001>
module attributes {stable_mosaic.version = 11 : i64} {
  func.func @_q_proj_kernel(%arg0: i32, %arg1: i32, %arg2: memref<1x128x4xf32, #tpu.memory_space<vmem>>, %arg3: memref<4x2xf32, #tpu.memory_space<vmem>>, %arg4: memref<1x2xf32, #tpu.memory_space<vmem>>, %arg5: memref<1x128x2xf32, #tpu.memory_space<vmem>>) attributes {dimension_semantics = [#tpu.dimension_semantics<parallel>, #tpu.dimension_semantics<parallel>], iteration_bounds = array<i64: 2, 1>, scalar_prefetch = 0 : i64, scratch_operands = 0 : i64, tpu.core_type = #tpu.core_type<tc>, window_params = [{transform_indices = @transform_0, window_bounds = array<i64: 1, 128, 4>}, {pipeline_mode = #tpu.pipeline_mode<synchronous>, transform_indices = @transform_1, window_bounds = array<i64: 4, 2>}, {pipeline_mode = #tpu.pipeline_mode<synchronous>, transform_indices = @transform_2, window_bounds = array<i64: 1, 2>}, {transform_indices = @transform_3, window_bounds = array<i64: 1, 128, 2>}]} {
    %c0 = arith.constant 0 : index
    %c0_0 = arith.constant 0 : index
    %c0_1 = arith.constant 0 : index
    %0 = vector.load %arg2[%c0, %c0_0, %c0_1] : memref<1x128x4xf32, #tpu.memory_space<vmem>>, vector<1x128x4xf32>
    %1 = vector.shape_cast %0 : vector<1x128x4xf32> to vector<128x4xf32>
    %c0_2 = arith.constant 0 : index
    %c0_3 = arith.constant 0 : index
    %2 = vector.load %arg3[%c0_2, %c0_3] : memref<4x2xf32, #tpu.memory_space<vmem>>, vector<4x2xf32>
    %cst = arith.constant dense<0.000000e+00> : vector<128x2xf32>
    %3 = tpu.matmul %1, %2, %cst {dimension_numbers = #tpu.dot_dimension_numbers<[1], [0], [0], [1], [0, 0, 1, 1], [], []>} : vector<128x4xf32>, vector<4x2xf32>, vector<128x2xf32> -> vector<128x2xf32>
    %c0_4 = arith.constant 0 : index
    %c0_5 = arith.constant 0 : index
    %4 = vector.load %arg4[%c0_4, %c0_5] : memref<1x2xf32, #tpu.memory_space<vmem>>, vector<1x2xf32>
    %5 = vector.broadcast %4 : vector<1x2xf32> to vector<128x2xf32>
    %6 = arith.addf %3, %5 : vector<128x2xf32>
    %c0_6 = arith.constant 0 : index
    %c0_7 = arith.constant 0 : index
    %c0_8 = arith.constant 0 : index
    %7 = vector.load %arg5[%c0_6, %c0_7, %c0_8] : memref<1x128x2xf32, #tpu.memory_space<vmem>>, vector<1x128x2xf32>
    %8 = vector.shape_cast %7 : vector<1x128x2xf32> to vector<128x2xf32>
    %9 = vector.shape_cast %6 : vector<128x2xf32> to vector<1x128x2xf32>
    tpu.vector_store %arg5[%c0_6, %c0_7, %c0_8], %9 {strides = array<i32>} : memref<1x128x2xf32, #tpu.memory_space<vmem>>, vector<1x128x2xf32>,
    return
  }
  func.func @transform_0(%arg0: i32, %arg1: i32) -> (i32, i32, i32) {
    %c0_i32 = arith.constant 0 : i32
    %c0_i32_0 = arith.constant 0 : i32
    return %arg0, %arg1, %c0_i32 : i32, i32, i32
  }
  func.func @transform_1(%arg0: i32, %arg1: i32) -> (i32, i32) {
    %c0_i32 = arith.constant 0 : i32
    %c0_i32_0 = arith.constant 0 : i32
    %c0_i32_1 = arith.constant 0 : i32
    return %c0_i32, %c0_i32_0 : i32, i32
  }
  func.func @transform_2(%arg0: i32, %arg1: i32) -> (i32, i32) {
    %c0_i32 = arith.constant 0 : i32
    %c0_i32_0 = arith.constant 0 : i32
    %c0_i32_1 = arith.constant 0 : i32
    return %c0_i32, %c0_i32_0 : i32, i32
  }
  func.func @transform_3(%arg0: i32, %arg1: i32) -> (i32, i32, i32) {
    %c0_i32 = arith.constant 0 : i32
    %c0_i32_0 = arith.constant 0 : i32
    return %arg0, %arg1, %c0_i32 : i32, i32, i32
  }
}

</mosaic_0001>

<llo_original>
// kernel: tpu_custom_call.1
$region0: #{tpu_custom_call.1}
  #allocation0 [shape = 'u32[]', space=smem, size = 0x4, offset = 0x4, fixed_abs, tag = 'smem constant byte address 0x4 - core index']
  #allocation1 [shape = 'u32[144,128]{1,0:T(1,128)}', space=vmem, size = 0x12000, scoped, tag = 'internal scratch']
  %s0 = inlined_call_operand.vmem [shape: f32[2,128,4], index: 0, kind: input, shape index: {}]
  %s1 = inlined_call_operand.vmem [shape: f32[4,2], index: 1, kind: input, shape index: {}]
  %s2 = inlined_call_operand.vmem [shape: f32[1,2], index: 2, kind: input, shape index: {}]
  %s3 = inlined_call_operand.vmem [shape: f32[2,128,2], index: 3, kind: output, shape index: {}]
  %s4 = sld [smem:[#allocation0]]
  $region45: #{tpu_custom_call.1} parent=0
    _
  %s6 = ssub.s32 1, %s4
  %s7 = scalar_select 0, %s6, %s4
  loop: start=0, step=1, limit=4
  $region2: #{tpu_custom_call.1} parent=0 // loop_pre_header
    _
  $region3: #{tpu_custom_call.1} parent=0 // loop_header
    %s9 = sphi 0, %s13
    %p10 = scmp.ge.s32.totalorder %s9, 4
    %s16 = sphi 0, %s28
    %s17 = sphi 0, %s24
    %s18 = sphi 0, %s16
    %s19 = sphi 0, %s17
    %s20 = sphi 0, %s18
    %s21 = sphi 0, %s19
    %s33 = sphi 0, %s35
    %s36 = sphi 0, %s33
    %s37 = sphi 0, %s36
    %s53 = sphi 0, %s37
    %s57 = sphi 0, %s57
    %s59 = sphi 0, %s57
    %s60 = sphi 0, %s59
    %s74 = sphi 0, %s60
    %s78 = sphi 0, %s78
    %s80 = sphi 0, %s78
    %s81 = sphi 0, %s80
    %s95 = sphi 0, %s81
    %s103 = sphi 0, %s105
    %s106 = sphi 0, %s103
    %s107 = sphi 0, %s106
    %s123 = sphi 0, %s107
  $region4: #{tpu_custom_call.1} parent=0 // loop_header_branch
    %12 = sbr.rel (%p10) target = $region8
  $region5: #{tpu_custom_call.1} parent=0 // loop_body
    %s14 = ssub.s32 %s9, 1
    %s15 = ssub.s32 %s9, 2
    %s22 = sadd.s32 1, %s17
    %p23 = scmp.ge.s32.totalorder %s22, 1
    %s24 = scalar_select %p23, 0, %s22
    %s25 = sadd.s32 1, %s16
    %s26 = scalar_select %p23, %s25, %s16
    %p27 = scmp.ge.s32.totalorder %s26, 2
    %s28 = scalar_select %p27, 0, %s26
    %s29 = ssub.s32 %s16, %s28
    %s30 = ssub.s32 %s17, %s24
    %s31 = sor.u32 %s29, %s30
    %p32 = scmp.eq.s32.totalorder %s31, 0
    %s34 = sadd.s32 %s33, 1
    %s35 = scalar_select %p32, %s33, %s34
    %p38 = pneg %p32
    %p39 = scmp.eq.s32.totalorder %s9, 1
    %p40 = por %p38, %p39
    %p41 = scmp.ne.s32.totalorder %s33, %s36
    %p42 = scmp.eq.s32.totalorder %s9, 0
    %p43 = por %p41, %p42
    %p44 = scmp.ne.s32.totalorder %s33, %s36
    %p45 = scmp.eq.s32.totalorder %s14, 1
    %p46 = por %p44, %p45
    %p47 = scmp.ne.s32.totalorder %s36, %s37
    %p48 = scmp.eq.s32.totalorder %s14, 0
    %p49 = por %p47, %p48
    %p50 = scmp.ne.s32.totalorder %s36, %s37
    %p51 = scmp.eq.s32.totalorder %s15, 1
    %p52 = por %p50, %p51
    %p54 = scmp.ne.s32.totalorder %s37, %s53
    %p55 = scmp.eq.s32.totalorder %s15, 0
    %p56 = por %p54, %p55
    %s58 = sadd.s32 %s57, 1
    %p61 = scmp.eq.s32.totalorder %s9, 1
    %p62 = scmp.ne.s32.totalorder %s57, %s59
    %p63 = scmp.eq.s32.totalorder %s9, 0
    %p64 = por %p62, %p63
    %p65 = scmp.ne.s32.totalorder %s57, %s59
    %p66 = scmp.eq.s32.totalorder %s14, 1
    %p67 = por %p65, %p66
    %p68 = scmp.ne.s32.totalorder %s59, %s60
    %p69 = scmp.eq.s32.totalorder %s14, 0
    %p70 = por %p68, %p69
    %p71 = scmp.ne.s32.totalorder %s59, %s60
    %p72 = scmp.eq.s32.totalorder %s15, 1
    %p73 = por %p71, %p72
    %p75 = scmp.ne.s32.totalorder %s60, %s74
    %p76 = scmp.eq.s32.totalorder %s15, 0
    %p77 = por %p75, %p76
    %s79 = sadd.s32 %s78, 1
    %p82 = scmp.eq.s32.totalorder %s9, 1
    %p83 = scmp.ne.s32.totalorder %s78, %s80
    %p84 = scmp.eq.s32.totalorder %s9, 0
    %p85 = por %p83, %p84
    %p86 = scmp.ne.s32.totalorder %s78, %s80
    %p87 = scmp.eq.s32.totalorder %s14, 1
    %p88 = por %p86, %p87
    %p89 = scmp.ne.s32.totalorder %s80, %s81
    %p90 = scmp.eq.s32.totalorder %s14, 0
    %p91 = por %p89, %p90
    %p92 = scmp.ne.s32.totalorder %s80, %s81
    %p93 = scmp.eq.s32.totalorder %s15, 1
    %p94 = por %p92, %p93
    %p96 = scmp.ne.s32.totalorder %s81, %s95
    %p97 = scmp.eq.s32.totalorder %s15, 0
    %p98 = por %p96, %p97
    %s99 = ssub.s32 %s16, %s28
    %s100 = ssub.s32 %s17, %s24
    %s101 = sor.u32 %s99, %s100
    %p102 = scmp.eq.s32.totalorder %s101, 0
    %s104 = sadd.s32 %s103, 1
    %s105 = scalar_select %p102, %s103, %s104
    %p108 = pneg %p102
    %p109 = scmp.eq.s32.totalorder %s9, 1
    %p110 = por %p108, %p109
    %p111 = scmp.ne.s32.totalorder %s103, %s106
    %p112 = scmp.eq.s32.totalorder %s9, 0
    %p113 = por %p111, %p112
    %p114 = scmp.ne.s32.totalorder %s103, %s106
    %p115 = scmp.eq.s32.totalorder %s14, 1
    %p116 = por %p114, %p115
    %p117 = scmp.ne.s32.totalorder %s106, %s107
    %p118 = scmp.eq.s32.totalorder %s14, 0
    %p119 = por %p117, %p118
    %p120 = scmp.ne.s32.totalorder %s106, %s107
    %p121 = scmp.eq.s32.totalorder %s15, 1
    %p122 = por %p120, %p121
    %p124 = scmp.ne.s32.totalorder %s107, %s123
    %p125 = scmp.eq.s32.totalorder %s15, 0
    %p126 = por %p124, %p125
    %p127 = scmp.le.s32.totalorder 1, %s9
    %p128 = scmp.lt.s32.totalorder %s9, 3
    %p129 = pnand %p127, %p128
    %p130 = pneg %p129
    // Predicated region
    $region9: #{tpu_custom_call.1} parent=5 // pred_check
      _
    $region10: #{tpu_custom_call.1} parent=5 // pred_check_branch
      %132 = sbr.rel (%p129) target = $region12
    $region11: #{tpu_custom_call.1} parent=5 // pred_region
      %s133 = ssub.s32 %s9, 1
      // Predicated region
      $region13: #{tpu_custom_call.1} parent=11 // pred_check
        %p134 = pneg %p70
      $region14: #{tpu_custom_call.1} parent=11 // pred_check_branch
        %136 = sbr.rel (%p134) target = $region16
      $region15: #{tpu_custom_call.1} parent=11 // pred_region
        _
      $region16: #{tpu_custom_call.1} parent=11 // pred_fallthru
        _
      // Predicated region
      $region17: #{tpu_custom_call.1} parent=11 // pred_check
        %p137 = pneg %p91
      $region18: #{tpu_custom_call.1} parent=11 // pred_check_branch
        %139 = sbr.rel (%p137) target = $region20
      $region19: #{tpu_custom_call.1} parent=11 // pred_region
        _
      $region20: #{tpu_custom_call.1} parent=11 // pred_fallthru
        _
    $region12: #{tpu_custom_call.1} parent=5 // pred_fallthru
      _
    %p140 = scmp.lt.s32.totalorder %s9, 2
    // Predicated region
    $region21: #{tpu_custom_call.1} parent=5 // pred_check
      %p141 = pneg %p140
    $region22: #{tpu_custom_call.1} parent=5 // pred_check_branch
      %143 = sbr.rel (%p141) target = $region24
    $region23: #{tpu_custom_call.1} parent=5 // pred_region
      // Predicated region
      $region25: #{tpu_custom_call.1} parent=23 // pred_check
        %p144 = pneg %p43
      $region26: #{tpu_custom_call.1} parent=23 // pred_check_branch
        %146 = sbr.rel (%p144) target = $region28
      $region27: #{tpu_custom_call.1} parent=23 // pred_region
        %s147 = smul.u32 16, %s17
        %p148 = scmp.lt.s32.totalorder %s16, 1
        %s149 = scalar_select %p148, %s16, 1
        %p150 = scmp.lt.s32.totalorder %s147, 15
        %s151 = scalar_select %p150, %s147, 15
        %s152 = smul.addr %s149, 16
        %s153 = sadd.s32 %s151, %s152
        %s154 = smul.addr %s153, 8
        %s155 = scalar_lea.vmem %s0, %s154
        %s156 = smul.u32 16, %s17
      $region28: #{tpu_custom_call.1} parent=23 // pred_fallthru
        _
    $region24: #{tpu_custom_call.1} parent=5 // pred_fallthru
      _
    %p157 = scmp.le.s32.totalorder 1, %s9
    %p158 = scmp.lt.s32.totalorder %s9, 3
    %p159 = pnand %p157, %p158
    %p160 = pneg %p159
    // Predicated region
    $region29: #{tpu_custom_call.1} parent=5 // pred_check
      _
    $region30: #{tpu_custom_call.1} parent=5 // pred_check_branch
      %162 = sbr.rel (%p159) target = $region32
    $region31: #{tpu_custom_call.1} parent=5 // pred_region
      %s163 = ssub.s32 %s9, 1
      %s164 = smul.u32 16, %s19
      %p165 = scmp.lt.s32.totalorder %s18, 1
      %s166 = scalar_select %p165, %s18, 1
      %p167 = scmp.lt.s32.totalorder %s164, 15
      %s168 = scalar_select %p167, %s164, 15
      %s169 = smul.addr %s166, 16
      %s170 = sadd.s32 %s168, %s169
      %s171 = smul.addr %s170, 8
      %s172 = scalar_lea.vmem %s0, %s171
      %p173 = pneg %p49
      %p174 = pneg %p46
      %p175 = pneg %p70
      %p176 = pneg %p67
      %p177 = pneg %p91
      %p178 = pneg %p88
      %p179 = pneg %p119
      %p180 = pneg %p116
      %s181 = smul.u32 16, %s19
      %p182 = scmp.lt.s32.totalorder %s18, 1
      %s183 = scalar_select %p182, %s18, 1
      %p184 = scmp.lt.s32.totalorder %s181, 15
      %s185 = scalar_select %p184, %s181, 15
      %s186 = smul.addr %s183, 16
      %s187 = sadd.s32 %s185, %s186
      %s188 = smul.addr %s187, 8
      %s189 = scalar_lea.vmem %s3, %s188
      %s190 = smul.u32 16, %s19
      %p191 = scmp.lt.s32.totalorder %s18, 1
      %s192 = scalar_select %p191, %s18, 1
      %p193 = scmp.lt.s32.totalorder %s190, 15
      %s194 = scalar_select %p193, %s190, 15
      %s195 = smul.addr %s192, 16
      %s196 = sadd.s32 %s194, %s195
      %s197 = smul.addr %s196, 8
      %s198 = scalar_lea.vmem %s0, %s197
      %s199 = smul.u32 16, %s19
      %s200 = smul.u32 16, %s19
      %p201 = scmp.lt.s32.totalorder %s18, 1
      %s202 = scalar_select %p201, %s18, 1
      %p203 = scmp.lt.s32.totalorder %s200, 15
      %s204 = scalar_select %p203, %s200, 15
      %s205 = smul.addr %s202, 16
      %s206 = sadd.s32 %s204, %s205
      %s207 = smul.addr %s206, 8
      %s208 = scalar_lea.vmem %s3, %s207
      %s209 = smul.u32 16, %s19
      %v210 = vld [vmem:[%s198] sm:$0xff]
      %v211 = vld [vmem:[%s198 + $0x8] sm:$0xff]
      %v212 = vld [vmem:[%s198 + $0x10] sm:$0xff]
      %v213 = vld [vmem:[%s198 + $0x18] sm:$0xff]
      %v214 = vld [vmem:[%s198 + $0x20] sm:$0xff]
      %v215 = vld [vmem:[%s198 + $0x28] sm:$0xff]
      %v216 = vld [vmem:[%s198 + $0x30] sm:$0xff]
      %v217 = vld [vmem:[%s198 + $0x38] sm:$0xff]
      %v218 = vld [vmem:[%s198 + $0x40] sm:$0xff]
      %v219 = vld [vmem:[%s198 + $0x48] sm:$0xff]
      %v220 = vld [vmem:[%s198 + $0x50] sm:$0xff]
      %v221 = vld [vmem:[%s198 + $0x58] sm:$0xff]
      %v222 = vld [vmem:[%s198 + $0x60] sm:$0xff]
      %v223 = vld [vmem:[%s198 + $0x68] sm:$0xff]
      %v224 = vld [vmem:[%s198 + $0x70] sm:$0xff]
      %v225 = vld [vmem:[%s198 + $0x78] sm:$0xff]
      %v226 = vld [vmem:[%s1] sm:$0xf]
      %v227 = vld [vmem:[%s2] sm:$0x1]
      %v229 = vlaneseq
      %v230 = vshrl.u32 %v229, 7
      %v231 = vsub.s32 0, %v230
      %v232 = vrot.slane %v227, %v231
      %vm234 = vcmask 31744
      %v236 = vsel %vm234, %v210, 0
      %v239 = vsel %vm234, %v211, 0
      %v242 = vsel %vm234, %v212, 0
      %v245 = vsel %vm234, %v213, 0
      %v248 = vsel %vm234, %v214, 0
      %v251 = vsel %vm234, %v215, 0
      %v254 = vsel %vm234, %v216, 0
      %v257 = vsel %vm234, %v217, 0
      %v260 = vsel %vm234, %v218, 0
      %v263 = vsel %vm234, %v219, 0
      %v266 = vsel %vm234, %v220, 0
      %v269 = vsel %vm234, %v221, 0
      %v272 = vsel %vm234, %v222, 0
      %v275 = vsel %vm234, %v223, 0
      %v278 = vsel %vm234, %v224, 0
      %v281 = vsel %vm234, %v225, 0
      %vm283 = vcmask 1043456
      %v285 = vsel %vm283, %v226, 0
      %287 = vmatprep.subr.mxu0 0.0
      %288 = vmatpush1.msra.mxu0 0.0
      %289 = vmatprep.subr.mxu0 0.0
      %290 = vmatpush1.msra.mxu0 0.0
      %291 = vmatprep.subr.mxu0 0.0
      %292 = vmatpush1.msra.mxu0 0.0
      %293 = vmatprep.subr.mxu0 0.0
      %294 = vmatpush1.msra.mxu0 0.0
      %295 = vmatprep.subr.mxu0 0.0
      %296 = vmatpush1.msra.mxu0 0.0
      %297 = vmatprep.subr.mxu0 0.0
      %298 = vmatpush1.msra.mxu0 0.0
      %299 = vmatprep.subr.mxu0 0.0
      %300 = vmatpush1.msra.mxu0 0.0
      %301 = vmatprep.subr.mxu0 0.0
      %302 = vmatpush1.msra.mxu0 0.0
      %303 = vmatprep.subr.mxu0 0.0
      %304 = vmatpush1.msra.mxu0 0.0
      %305 = vmatprep.subr.mxu0 0.0
      %306 = vmatpush1.msra.mxu0 0.0
      %307 = vmatprep.subr.mxu0 0.0
      %308 = vmatpush1.msra.mxu0 0.0
      %309 = vmatprep.subr.mxu0 0.0
      %310 = vmatpush1.msra.mxu0 0.0
      %311 = vmatprep.subr.mxu0 0.0
      %312 = vmatpush1.msra.mxu0 0.0
      %313 = vmatprep.subr.mxu0 0.0
      %314 = vmatpush1.msra.mxu0 0.0
      %315 = vmatprep.subr.mxu0 0.0
      %316 = vmatpush1.msra.mxu0 0.0
      %317 = vmatprep.subr.mxu0 0.0
      %318 = vmatpush1.msra.mxu0 %v285
      %319 = vmatprep.subr.mxu0 0.0
      %320 = vmatpush2.msra.mxu0 0.0
      %321 = vmatprep.subr.mxu0 0.0
      %322 = vmatpush2.msra.mxu0 0.0
      %323 = vmatprep.subr.mxu0 0.0
      %324 = vmatpush2.msra.mxu0 0.0
      %325 = vmatprep.subr.mxu0 0.0
      %326 = vmatpush2.msra.mxu0 0.0
      %327 = vmatprep.subr.mxu0 0.0
      %328 = vmatpush2.msra.mxu0 0.0
      %329 = vmatprep.subr.mxu0 0.0
      %330 = vmatpush2.msra.mxu0 0.0
      %331 = vmatprep.subr.mxu0 0.0
      %332 = vmatpush2.msra.mxu0 0.0
      %333 = vmatprep.subr.mxu0 0.0
      %334 = vmatpush2.msra.mxu0 0.0
      %335 = vmatprep.subr.mxu0 0.0
      %336 = vmatpush2.msra.mxu0 0.0
      %337 = vmatprep.subr.mxu0 0.0
      %338 = vmatpush2.msra.mxu0 0.0
      %339 = vmatprep.subr.mxu0 0.0
      %340 = vmatpush2.msra.mxu0 0.0
      %341 = vmatprep.subr.mxu0 0.0
      %342 = vmatpush2.msra.mxu0 0.0
      %343 = vmatprep.subr.mxu0 0.0
      %344 = vmatpush2.msra.mxu0 0.0
      %345 = vmatprep.subr.mxu0 0.0
      %346 = vmatpush2.msra.mxu0 0.0
      %347 = vmatprep.subr.mxu0 0.0
      %348 = vmatpush2.msra.mxu0 0.0
      %349 = vmatprep.subr.mxu0 0.0
      %350 = vmatpush2.msra.mxu0 0.0
      %351 = vmatprep.mubr.f32.mxu0 0.0
      %352 = vmatmul.mubr.f32.gmra.mxu0 %v236
      %v353 = vpop.f32.mrf.mxu0
      %v354 = vadd.f32 %v232, %v353
      %v355 = vpop.f32.mrf.mxu0
      %356 = vmatprep.mubr.f32.mxu0 0.0
      %357 = vmatmul.mubr.f32.gmra.mxu0 %v239
      %v358 = vpop.f32.mrf.mxu0
      %v359 = vadd.f32 %v232, %v358
      %v360 = vpop.f32.mrf.mxu0
      %361 = vmatprep.mubr.f32.mxu0 0.0
      %362 = vmatmul.mubr.f32.gmra.mxu0 %v242
      %v363 = vpop.f32.mrf.mxu0
      %v364 = vadd.f32 %v232, %v363
      %v365 = vpop.f32.mrf.mxu0
      %366 = vmatprep.mubr.f32.mxu0 0.0
      %367 = vmatmul.mubr.f32.gmra.mxu0 %v245
      %v368 = vpop.f32.mrf.mxu0
      %v369 = vadd.f32 %v232, %v368
      %v370 = vpop.f32.mrf.mxu0
      %371 = vmatprep.mubr.f32.mxu0 0.0
      %372 = vmatmul.mubr.f32.gmra.mxu0 %v248
      %v373 = vpop.f32.mrf.mxu0
      %v374 = vadd.f32 %v232, %v373
      %v375 = vpop.f32.mrf.mxu0
      %376 = vmatprep.mubr.f32.mxu0 0.0
      %377 = vmatmul.mubr.f32.gmra.mxu0 %v251
      %v378 = vpop.f32.mrf.mxu0
      %v379 = vadd.f32 %v232, %v378
      %v380 = vpop.f32.mrf.mxu0
      %381 = vmatprep.mubr.f32.mxu0 0.0
      %382 = vmatmul.mubr.f32.gmra.mxu0 %v254
      %v383 = vpop.f32.mrf.mxu0
      %v384 = vadd.f32 %v232, %v383
      %v385 = vpop.f32.mrf.mxu0
      %386 = vmatprep.mubr.f32.mxu0 0.0
      %387 = vmatmul.mubr.f32.gmra.mxu0 %v257
      %v388 = vpop.f32.mrf.mxu0
      %v389 = vadd.f32 %v232, %v388
      %v390 = vpop.f32.mrf.mxu0
      %391 = vmatprep.mubr.f32.mxu0 0.0
      %392 = vmatmul.mubr.f32.gmra.mxu0 %v260
      %v393 = vpop.f32.mrf.mxu0
      %v394 = vadd.f32 %v232, %v393
      %v395 = vpop.f32.mrf.mxu0
      %396 = vmatprep.mubr.f32.mxu0 0.0
      %397 = vmatmul.mubr.f32.gmra.mxu0 %v263
      %v398 = vpop.f32.mrf.mxu0
      %v399 = vadd.f32 %v232, %v398
      %v400 = vpop.f32.mrf.mxu0
      %401 = vmatprep.mubr.f32.mxu0 0.0
      %402 = vmatmul.mubr.f32.gmra.mxu0 %v266
      %v403 = vpop.f32.mrf.mxu0
      %v404 = vadd.f32 %v232, %v403
      %v405 = vpop.f32.mrf.mxu0
      %406 = vmatprep.mubr.f32.mxu0 0.0
      %407 = vmatmul.mubr.f32.gmra.mxu0 %v269
      %v408 = vpop.f32.mrf.mxu0
      %v409 = vadd.f32 %v232, %v408
      %v410 = vpop.f32.mrf.mxu0
      %411 = vmatprep.mubr.f32.mxu0 0.0
      %412 = vmatmul.mubr.f32.gmra.mxu0 %v272
      %v413 = vpop.f32.mrf.mxu0
      %v414 = vadd.f32 %v232, %v413
      %v415 = vpop.f32.mrf.mxu0
      %416 = vmatprep.mubr.f32.mxu0 0.0
      %417 = vmatmul.mubr.f32.gmra.mxu0 %v275
      %v418 = vpop.f32.mrf.mxu0
      %v419 = vadd.f32 %v232, %v418
      %v420 = vpop.f32.mrf.mxu0
      %421 = vmatprep.mubr.f32.mxu0 0.0
      %422 = vmatmul.mubr.f32.gmra.mxu0 %v278
      %v423 = vpop.f32.mrf.mxu0
      %v424 = vadd.f32 %v232, %v423
      %v425 = vpop.f32.mrf.mxu0
      %426 = vmatprep.mubr.f32.mxu0 0.0
      %427 = vmatmul.mubr.f32.gmra.mxu0 %v281
      %v428 = vpop.f32.mrf.mxu0
      %v429 = vadd.f32 %v232, %v428
      %v430 = vpop.f32.mrf.mxu0
      %431 = vdwg.mxu0
      %vm432 = vcmask 15360
      %433 = vst.msk [vmem:[%s208] sm:$0xff] %vm432, %v354
      %434 = vst.msk [vmem:[%s208 + $0x8] sm:$0xff] %vm432, %v359
      %435 = vst.msk [vmem:[%s208 + $0x10] sm:$0xff] %vm432, %v364
      %436 = vst.msk [vmem:[%s208 + $0x18] sm:$0xff] %vm432, %v369
      %437 = vst.msk [vmem:[%s208 + $0x20] sm:$0xff] %vm432, %v374
      %438 = vst.msk [vmem:[%s208 + $0x28] sm:$0xff] %vm432, %v379
      %439 = vst.msk [vmem:[%s208 + $0x30] sm:$0xff] %vm432, %v384
      %440 = vst.msk [vmem:[%s208 + $0x38] sm:$0xff] %vm432, %v389
      %441 = vst.msk [vmem:[%s208 + $0x40] sm:$0xff] %vm432, %v394
      %442 = vst.msk [vmem:[%s208 + $0x48] sm:$0xff] %vm432, %v399
      %443 = vst.msk [vmem:[%s208 + $0x50] sm:$0xff] %vm432, %v404
      %444 = vst.msk [vmem:[%s208 + $0x58] sm:$0xff] %vm432, %v409
      %445 = vst.msk [vmem:[%s208 + $0x60] sm:$0xff] %vm432, %v414
      %446 = vst.msk [vmem:[%s208 + $0x68] sm:$0xff] %vm432, %v419
      %447 = vst.msk [vmem:[%s208 + $0x70] sm:$0xff] %vm432, %v424
      %448 = vst.msk [vmem:[%s208 + $0x78] sm:$0xff] %vm432, %v429
      %s449 = smul.u32 16, %s19
      %p450 = scmp.lt.s32.totalorder %s18, 1
      %s451 = scalar_select %p450, %s18, 1
      %p452 = scmp.lt.s32.totalorder %s449, 15
      %s453 = scalar_select %p452, %s449, 15
      %s454 = smul.addr %s451, 16
      %s455 = sadd.s32 %s453, %s454
      %s456 = smul.addr %s455, 8
      %s457 = scalar_lea.vmem %s3, %s456
      // Predicated region
      $region33: #{tpu_custom_call.1} parent=31 // pred_check
        %p458 = pneg %p116
      $region34: #{tpu_custom_call.1} parent=31 // pred_check_branch
        %460 = sbr.rel (%p458) target = $region36
      $region35: #{tpu_custom_call.1} parent=31 // pred_region
        %s461 = smul.u32 16, %s19
      $region36: #{tpu_custom_call.1} parent=31 // pred_fallthru
        _
    $region32: #{tpu_custom_call.1} parent=5 // pred_fallthru
      _
    %p462 = scmp.le.s32.totalorder 2, %s9
    // Predicated region
    $region37: #{tpu_custom_call.1} parent=5 // pred_check
      %p463 = pneg %p462
    $region38: #{tpu_custom_call.1} parent=5 // pred_check_branch
      %465 = sbr.rel (%p463) target = $region40
    $region39: #{tpu_custom_call.1} parent=5 // pred_region
      %s466 = ssub.s32 %s9, 2
      // Predicated region
      $region41: #{tpu_custom_call.1} parent=39 // pred_check
        %p467 = pneg %p122
      $region42: #{tpu_custom_call.1} parent=39 // pred_check_branch
        %469 = sbr.rel (%p467) target = $region44
      $region43: #{tpu_custom_call.1} parent=39 // pred_region
        %s470 = smul.u32 16, %s21
        %p471 = scmp.lt.s32.totalorder %s20, 1
        %s472 = scalar_select %p471, %s20, 1
        %p473 = scmp.lt.s32.totalorder %s470, 15
        %s474 = scalar_select %p473, %s470, 15
        %s475 = smul.addr %s472, 16
        %s476 = sadd.s32 %s474, %s475
        %s477 = smul.addr %s476, 8
        %s478 = scalar_lea.vmem %s3, %s477
      $region44: #{tpu_custom_call.1} parent=39 // pred_fallthru
        _
    $region40: #{tpu_custom_call.1} parent=5 // pred_fallthru
      _
  $region6: #{tpu_custom_call.1} parent=0 // loop_footer
    %s13 = sadd.s32 1, %s9
  $region7: #{tpu_custom_call.1} parent=0 // loop_footer_branch
    %8 = sbr.rel target = $region3
  $region8: #{tpu_custom_call.1} parent=0 // loop_exit
    _

</llo_original>
